<compile_context>
chip_gen: v7x
topology: tpu7x:2x2x1
jax: 0.10.0
libtpu: 0.0.40
codegen_flags: <defaults>
</compile_context>

<pallas_src>
import functools

import jax
import jax.numpy as jnp
from jax.experimental import pallas as pl
from jax.experimental.pallas import tpu as pltpu


def policy_kernel(x_ref, w1_ref, b1_ref, w2_ref, b2_ref, out_ref):
    # Block shapes:
    #   x_ref  : (TB, S)  natural batch-major input tile
    #   w1_ref : (H, S)   fc1 weight, PyTorch (out, in) layout, grid-resident
    #   b1_ref : (H, 1)
    #   w2_ref : (A, H)   fc2 weight, grid-resident
    #   b2_ref : (A, 1)
    #   out_ref: (TB, A)  natural batch-major output tile
    s = x_ref.shape[1]
    h_dim = w1_ref.shape[0]
    a_dim = w2_ref.shape[0]

    # One in-VMEM transpose puts the batch on the lane axis; everything below
    # is lane-dense (128 rows per vreg) and the XLU work overlaps the DMAs.
    xt = jnp.transpose(x_ref[...])                       # (S, TB)
    w1 = w1_ref[...]                                     # (H, S)
    w2 = w2_ref[...]                                     # (A, H)

    # fc1 + ReLU as S broadcast-FMAs on the VPU (K = S is far too small for
    # the MXU to be worthwhile).
    h = b1_ref[...]                                      # (H, 1) -> broadcasts
    for k in range(s):
        h = h + w1[:, k:k + 1] * xt[k:k + 1, :]          # (H, TB)
    h = jnp.maximum(h, 0.0)

    # fc2 as H broadcast-FMAs -> logits (A, TB).
    logits = b2_ref[...]                                 # (A, 1) -> broadcasts
    for j in range(h_dim):
        logits = logits + w2[:, j:j + 1] * h[j:j + 1, :]

    if a_dim == 2:
        # Exact 2-class softmax: p0 = sigmoid(l0 - l1), p1 = 1 - p0.
        # One transcendental, no axis reductions, rows sum to exactly 1.
        d = logits[0:1, :] - logits[1:2, :]              # (1, TB)
        p0 = 1.0 / (1.0 + jnp.exp(-d))
        probs = jnp.concatenate([p0, 1.0 - p0], axis=0)  # (2, TB)
    else:
        # General stable softmax with exact normalisation (no approx recip).
        m = jnp.max(logits, axis=0, keepdims=True)
        e = jnp.exp(logits - m)
        probs = e / jnp.sum(e, axis=0, keepdims=True)

    # Write back in the caller's (batch-major) layout.
    out_ref[...] = jnp.transpose(probs).astype(out_ref.dtype)


def _round_up(n: int, m: int) -> int:
    return ((n + m - 1) // m) * m


@functools.partial(jax.jit, static_argnames=("block_b",))
def policy_forward(x, w1, b1, w2, b2, *, block_b=16384):
    """Fused Policy forward pass.

    x : (B, state_size) f32
    w1: (16, state_size), b1: (16,)            (PyTorch nn.Linear convention)
    w2: (action_size, 16), b2: (action_size,)
    returns: (B, action_size) softmax probabilities (f32)
    """
    B, S = x.shape
    H = w1.shape[0]
    A = w2.shape[0]

    # Batch tile: always a multiple of 128 lanes (never trust the caller), no
    # larger than the 128-rounded batch.
    lanes = _round_up(B, 128)
    tb = max(128, min(_round_up(block_b, 128), lanes))
    # Keep at least two grid steps whenever the batch spans >= 2 lane tiles so
    # dimension_semantics=("parallel",) can split work across v7x's two TCs.
    if lanes >= 256 and lanes // tb < 2:
        tb = _round_up((tb + 1) // 2, 128)
    b_pad = _round_up(B, tb)

    # Only wrapper-side data movement left: zero-pad the ragged batch tail
    # (no copy at all when B is already a multiple of the tile).
    xp = x if b_pad == B else jnp.pad(x, ((0, b_pad - B), (0, 0)))
    b1c = b1.reshape(H, 1)
    b2c = b2.reshape(A, 1)

    out = pl.pallas_call(
        policy_kernel,
        out_shape=jax.ShapeDtypeStruct((b_pad, A), jnp.float32),
        grid=(b_pad // tb,),
        in_specs=[
            pl.BlockSpec((tb, S), lambda i: (i, 0)),     # x: batch-tiled
            pl.BlockSpec((H, S), lambda i: (0, 0)),      # W1: resident
            pl.BlockSpec((H, 1), lambda i: (0, 0)),      # b1: resident
            pl.BlockSpec((A, H), lambda i: (0, 0)),      # W2: resident
            pl.BlockSpec((A, 1), lambda i: (0, 0)),      # b2: resident
        ],
        out_specs=pl.BlockSpec((tb, A), lambda i: (i, 0)),
        compiler_params=pltpu.CompilerParams(
            dimension_semantics=("parallel",)),
    )(xp, w1, b1c, w2, b2c)

    return out if b_pad == B else out[:B]


def _init_params(key, state_size=4, action_size=2):
    # Deterministic synthetic init (PyTorch's uniform fan-in scheme).
    k1, k2, k3, k4 = jax.random.split(key, 4)
    bound1 = 1.0 / (float(state_size) ** 0.5)
    bound2 = 1.0 / (16.0 ** 0.5)
    w1 = jax.random.uniform(k1, (16, state_size), jnp.float32, -bound1, bound1)
    b1 = jax.random.uniform(k2, (16,), jnp.float32, -bound1, bound1)
    w2 = jax.random.uniform(k3, (action_size, 16), jnp.float32, -bound2, bound2)
    b2 = jax.random.uniform(k4, (action_size,), jnp.float32, -bound2, bound2)
    return w1, b1, w2, b2


def _reference(x, w1, b1, w2, b2):
    h = jnp.maximum(x @ w1.T + b1, 0.0)
    logits = h @ w2.T + b2
    return jax.nn.softmax(logits, axis=1)


if __name__ == "__main__":
    key = jax.random.PRNGKey(0)
    k_params, k_x1, k_x2 = jax.random.split(key, 3)

    state_size, action_size = 4, 2
    w1, b1, w2, b2 = _init_params(k_params, state_size, action_size)

    # 1) Tiny batch (single 128-row tile, heavy padding).
    x1 = jax.random.normal(k_x1, (2, state_size), jnp.float32)
    out1 = jax.block_until_ready(policy_forward(x1, w1, b1, w2, b2))
    ref1 = _reference(x1, w1, b1, w2, b2)
    assert out1.shape == (2, action_size)
    assert jnp.allclose(out1, ref1, atol=1e-4, rtol=1e-4)
    assert jnp.allclose(jnp.sum(out1, axis=1), 1.0, atol=1e-4)

    # 2) Ragged batch with default tiling (tile auto-split -> 2 grid steps).
    x2 = jax.random.normal(k_x2, (300, state_size), jnp.float32)
    out2 = jax.block_until_ready(policy_forward(x2, w1, b1, w2, b2))
    ref2 = _reference(x2, w1, b1, w2, b2)
    assert out2.shape == (300, action_size)
    assert jnp.allclose(out2, ref2, atol=1e-4, rtol=1e-4)
    assert jnp.allclose(jnp.sum(out2, axis=1), 1.0, atol=1e-4)

    # 3) Same batch with a small, deliberately non-128-multiple tile request:
    #    rounded up to 128 -> 3 grid steps (the previously failing config).
    out3 = jax.block_until_ready(
        policy_forward(x2, w1, b1, w2, b2, block_b=100))
    assert out3.shape == (300, action_size)
    assert jnp.allclose(out3, ref2, atol=1e-4, rtol=1e-4)
    assert jnp.allclose(jnp.sum(out3, axis=1), 1.0, atol=1e-4)

    print("KERNEL_OK")
</pallas_src>

<mosaic_0001>
module attributes {stable_mosaic.version = 11 : i64} {
  func.func @policy_kernel(%arg0: i32, %arg1: memref<128x4xf32, #tpu.memory_space<vmem>>, %arg2: memref<16x4xf32, #tpu.memory_space<vmem>>, %arg3: memref<16x1xf32, #tpu.memory_space<vmem>>, %arg4: memref<2x16xf32, #tpu.memory_space<vmem>>, %arg5: memref<2x1xf32, #tpu.memory_space<vmem>>, %arg6: memref<128x2xf32, #tpu.memory_space<vmem>>) attributes {dimension_semantics = [#tpu.dimension_semantics<parallel>], iteration_bounds = array<i64: 1>, scalar_prefetch = 0 : i64, scratch_operands = 0 : i64, tpu.core_type = #tpu.core_type<tc>, window_params = [{transform_indices = @transform_0, window_bounds = array<i64: 128, 4>}, {pipeline_mode = #tpu.pipeline_mode<synchronous>, transform_indices = @transform_1, window_bounds = array<i64: 16, 4>}, {pipeline_mode = #tpu.pipeline_mode<synchronous>, transform_indices = @transform_2, window_bounds = array<i64: 16, 1>}, {pipeline_mode = #tpu.pipeline_mode<synchronous>, transform_indices = @transform_3, window_bounds = array<i64: 2, 16>}, {pipeline_mode = #tpu.pipeline_mode<synchronous>, transform_indices = @transform_4, window_bounds = array<i64: 2, 1>}, {transform_indices = @transform_5, window_bounds = array<i64: 128, 2>}]} {
    %c0 = arith.constant 0 : index
    %c0_0 = arith.constant 0 : index
    %0 = vector.load %arg1[%c0, %c0_0] : memref<128x4xf32, #tpu.memory_space<vmem>>, vector<128x4xf32>
    %1 = tpu.transpose %0, [1, 0] : vector<128x4xf32> -> vector<4x128xf32>
    %c0_1 = arith.constant 0 : index
    %c0_2 = arith.constant 0 : index
    %2 = vector.load %arg2[%c0_1, %c0_2] : memref<16x4xf32, #tpu.memory_space<vmem>>, vector<16x4xf32>
    %c0_3 = arith.constant 0 : index
    %c0_4 = arith.constant 0 : index
    %3 = vector.load %arg4[%c0_3, %c0_4] : memref<2x16xf32, #tpu.memory_space<vmem>>, vector<2x16xf32>
    %c0_5 = arith.constant 0 : index
    %c0_6 = arith.constant 0 : index
    %4 = vector.load %arg3[%c0_5, %c0_6] : memref<16x1xf32, #tpu.memory_space<vmem>>, vector<16x1xf32>
    %5 = vector.extract_strided_slice %2 {offsets = [0, 0], sizes = [16, 1], strides = [1, 1]} : vector<16x4xf32> to vector<16x1xf32>
    %6 = vector.extract_strided_slice %1 {offsets = [0, 0], sizes = [1, 128], strides = [1, 1]} : vector<4x128xf32> to vector<1x128xf32>
    %7 = vector.broadcast %5 : vector<16x1xf32> to vector<16x128xf32>
    %8 = vector.broadcast %6 : vector<1x128xf32> to vector<16x128xf32>
    %9 = arith.mulf %7, %8 : vector<16x128xf32>
    %10 = vector.broadcast %4 : vector<16x1xf32> to vector<16x128xf32>
    %11 = arith.addf %10, %9 : vector<16x128xf32>
    %12 = vector.extract_strided_slice %2 {offsets = [0, 1], sizes = [16, 1], strides = [1, 1]} : vector<16x4xf32> to vector<16x1xf32>
    %13 = vector.extract_strided_slice %1 {offsets = [1, 0], sizes = [1, 128], strides = [1, 1]} : vector<4x128xf32> to vector<1x128xf32>
    %14 = vector.broadcast %12 : vector<16x1xf32> to vector<16x128xf32>
    %15 = vector.broadcast %13 : vector<1x128xf32> to vector<16x128xf32>
    %16 = arith.mulf %14, %15 : vector<16x128xf32>
    %17 = arith.addf %11, %16 : vector<16x128xf32>
    %18 = vector.extract_strided_slice %2 {offsets = [0, 2], sizes = [16, 1], strides = [1, 1]} : vector<16x4xf32> to vector<16x1xf32>
    %19 = vector.extract_strided_slice %1 {offsets = [2, 0], sizes = [1, 128], strides = [1, 1]} : vector<4x128xf32> to vector<1x128xf32>
    %20 = vector.broadcast %18 : vector<16x1xf32> to vector<16x128xf32>
    %21 = vector.broadcast %19 : vector<1x128xf32> to vector<16x128xf32>
    %22 = arith.mulf %20, %21 : vector<16x128xf32>
    %23 = arith.addf %17, %22 : vector<16x128xf32>
    %24 = vector.extract_strided_slice %2 {offsets = [0, 3], sizes = [16, 1], strides = [1, 1]} : vector<16x4xf32> to vector<16x1xf32>
    %25 = vector.extract_strided_slice %1 {offsets = [3, 0], sizes = [1, 128], strides = [1, 1]} : vector<4x128xf32> to vector<1x128xf32>
    %26 = vector.broadcast %24 : vector<16x1xf32> to vector<16x128xf32>
    %27 = vector.broadcast %25 : vector<1x128xf32> to vector<16x128xf32>
    %28 = arith.mulf %26, %27 : vector<16x128xf32>
    %29 = arith.addf %23, %28 : vector<16x128xf32>
    %cst = arith.constant 0.000000e+00 : f32
    %30 = vector.broadcast %cst : f32 to vector<16x128xf32>
    %31 = arith.maximumf %29, %30 : vector<16x128xf32>
    %c0_7 = arith.constant 0 : index
    %c0_8 = arith.constant 0 : index
    %32 = vector.load %arg5[%c0_7, %c0_8] : memref<2x1xf32, #tpu.memory_space<vmem>>, vector<2x1xf32>
    %33 = vector.extract_strided_slice %3 {offsets = [0, 0], sizes = [2, 1], strides = [1, 1]} : vector<2x16xf32> to vector<2x1xf32>
    %34 = vector.extract_strided_slice %31 {offsets = [0, 0], sizes = [1, 128], strides = [1, 1]} : vector<16x128xf32> to vector<1x128xf32>
    %35 = vector.broadcast %33 : vector<2x1xf32> to vector<2x128xf32>
    %36 = vector.broadcast %34 : vector<1x128xf32> to vector<2x128xf32>
    %37 = arith.mulf %35, %36 : vector<2x128xf32>
    %38 = vector.broadcast %32 : vector<2x1xf32> to vector<2x128xf32>
    %39 = arith.addf %38, %37 : vector<2x128xf32>
    %40 = vector.extract_strided_slice %3 {offsets = [0, 1], sizes = [2, 1], strides = [1, 1]} : vector<2x16xf32> to vector<2x1xf32>
    %41 = vector.extract_strided_slice %31 {offsets = [1, 0], sizes = [1, 128], strides = [1, 1]} : vector<16x128xf32> to vector<1x128xf32>
    %42 = vector.broadcast %40 : vector<2x1xf32> to vector<2x128xf32>
    %43 = vector.broadcast %41 : vector<1x128xf32> to vector<2x128xf32>
    %44 = arith.mulf %42, %43 : vector<2x128xf32>
    %45 = arith.addf %39, %44 : vector<2x128xf32>
    %46 = vector.extract_strided_slice %3 {offsets = [0, 2], sizes = [2, 1], strides = [1, 1]} : vector<2x16xf32> to vector<2x1xf32>
    %47 = vector.extract_strided_slice %31 {offsets = [2, 0], sizes = [1, 128], strides = [1, 1]} : vector<16x128xf32> to vector<1x128xf32>
    %48 = vector.broadcast %46 : vector<2x1xf32> to vector<2x128xf32>
    %49 = vector.broadcast %47 : vector<1x128xf32> to vector<2x128xf32>
    %50 = arith.mulf %48, %49 : vector<2x128xf32>
    %51 = arith.addf %45, %50 : vector<2x128xf32>
    %52 = vector.extract_strided_slice %3 {offsets = [0, 3], sizes = [2, 1], strides = [1, 1]} : vector<2x16xf32> to vector<2x1xf32>
    %53 = vector.extract_strided_slice %31 {offsets = [3, 0], sizes = [1, 128], strides = [1, 1]} : vector<16x128xf32> to vector<1x128xf32>
    %54 = vector.broadcast %52 : vector<2x1xf32> to vector<2x128xf32>
    %55 = vector.broadcast %53 : vector<1x128xf32> to vector<2x128xf32>
    %56 = arith.mulf %54, %55 : vector<2x128xf32>
    %57 = arith.addf %51, %56 : vector<2x128xf32>
    %58 = vector.extract_strided_slice %3 {offsets = [0, 4], sizes = [2, 1], strides = [1, 1]} : vector<2x16xf32> to vector<2x1xf32>
    %59 = vector.extract_strided_slice %31 {offsets = [4, 0], sizes = [1, 128], strides = [1, 1]} : vector<16x128xf32> to vector<1x128xf32>
    %60 = vector.broadcast %58 : vector<2x1xf32> to vector<2x128xf32>
    %61 = vector.broadcast %59 : vector<1x128xf32> to vector<2x128xf32>
    %62 = arith.mulf %60, %61 : vector<2x128xf32>
    %63 = arith.addf %57, %62 : vector<2x128xf32>
    %64 = vector.extract_strided_slice %3 {offsets = [0, 5], sizes = [2, 1], strides = [1, 1]} : vector<2x16xf32> to vector<2x1xf32>
    %65 = vector.extract_strided_slice %31 {offsets = [5, 0], sizes = [1, 128], strides = [1, 1]} : vector<16x128xf32> to vector<1x128xf32>
    %66 = vector.broadcast %64 : vector<2x1xf32> to vector<2x128xf32>
    %67 = vector.broadcast %65 : vector<1x128xf32> to vector<2x128xf32>
    %68 = arith.mulf %66, %67 : vector<2x128xf32>
    %69 = arith.addf %63, %68 : vector<2x128xf32>
    %70 = vector.extract_strided_slice %3 {offsets = [0, 6], sizes = [2, 1], strides = [1, 1]} : vector<2x16xf32> to vector<2x1xf32>
    %71 = vector.extract_strided_slice %31 {offsets = [6, 0], sizes = [1, 128], strides = [1, 1]} : vector<16x128xf32> to vector<1x128xf32>
    %72 = vector.broadcast %70 : vector<2x1xf32> to vector<2x128xf32>
    %73 = vector.broadcast %71 : vector<1x128xf32> to vector<2x128xf32>
    %74 = arith.mulf %72, %73 : vector<2x128xf32>
    %75 = arith.addf %69, %74 : vector<2x128xf32>
    %76 = vector.extract_strided_slice %3 {offsets = [0, 7], sizes = [2, 1], strides = [1, 1]} : vector<2x16xf32> to vector<2x1xf32>
    %77 = vector.extract_strided_slice %31 {offsets = [7, 0], sizes = [1, 128], strides = [1, 1]} : vector<16x128xf32> to vector<1x128xf32>
    %78 = vector.broadcast %76 : vector<2x1xf32> to vector<2x128xf32>
    %79 = vector.broadcast %77 : vector<1x128xf32> to vector<2x128xf32>
    %80 = arith.mulf %78, %79 : vector<2x128xf32>
    %81 = arith.addf %75, %80 : vector<2x128xf32>
    %82 = vector.extract_strided_slice %3 {offsets = [0, 8], sizes = [2, 1], strides = [1, 1]} : vector<2x16xf32> to vector<2x1xf32>
    %83 = vector.extract_strided_slice %31 {offsets = [8, 0], sizes = [1, 128], strides = [1, 1]} : vector<16x128xf32> to vector<1x128xf32>
    %84 = vector.broadcast %82 : vector<2x1xf32> to vector<2x128xf32>
    %85 = vector.broadcast %83 : vector<1x128xf32> to vector<2x128xf32>
    %86 = arith.mulf %84, %85 : vector<2x128xf32>
    %87 = arith.addf %81, %86 : vector<2x128xf32>
    %88 = vector.extract_strided_slice %3 {offsets = [0, 9], sizes = [2, 1], strides = [1, 1]} : vector<2x16xf32> to vector<2x1xf32>
    %89 = vector.extract_strided_slice %31 {offsets = [9, 0], sizes = [1, 128], strides = [1, 1]} : vector<16x128xf32> to vector<1x128xf32>
    %90 = vector.broadcast %88 : vector<2x1xf32> to vector<2x128xf32>
    %91 = vector.broadcast %89 : vector<1x128xf32> to vector<2x128xf32>
    %92 = arith.mulf %90, %91 : vector<2x128xf32>
    %93 = arith.addf %87, %92 : vector<2x128xf32>
    %94 = vector.extract_strided_slice %3 {offsets = [0, 10], sizes = [2, 1], strides = [1, 1]} : vector<2x16xf32> to vector<2x1xf32>
    %95 = vector.extract_strided_slice %31 {offsets = [10, 0], sizes = [1, 128], strides = [1, 1]} : vector<16x128xf32> to vector<1x128xf32>
    %96 = vector.broadcast %94 : vector<2x1xf32> to vector<2x128xf32>
    %97 = vector.broadcast %95 : vector<1x128xf32> to vector<2x128xf32>
    %98 = arith.mulf %96, %97 : vector<2x128xf32>
    %99 = arith.addf %93, %98 : vector<2x128xf32>
    %100 = vector.extract_strided_slice %3 {offsets = [0, 11], sizes = [2, 1], strides = [1, 1]} : vector<2x16xf32> to vector<2x1xf32>
    %101 = vector.extract_strided_slice %31 {offsets = [11, 0], sizes = [1, 128], strides = [1, 1]} : vector<16x128xf32> to vector<1x128xf32>
    %102 = vector.broadcast %100 : vector<2x1xf32> to vector<2x128xf32>
    %103 = vector.broadcast %101 : vector<1x128xf32> to vector<2x128xf32>
    %104 = arith.mulf %102, %103 : vector<2x128xf32>
    %105 = arith.addf %99, %104 : vector<2x128xf32>
    %106 = vector.extract_strided_slice %3 {offsets = [0, 12], sizes = [2, 1], strides = [1, 1]} : vector<2x16xf32> to vector<2x1xf32>
    %107 = vector.extract_strided_slice %31 {offsets = [12, 0], sizes = [1, 128], strides = [1, 1]} : vector<16x128xf32> to vector<1x128xf32>
    %108 = vector.broadcast %106 : vector<2x1xf32> to vector<2x128xf32>
    %109 = vector.broadcast %107 : vector<1x128xf32> to vector<2x128xf32>
    %110 = arith.mulf %108, %109 : vector<2x128xf32>
    %111 = arith.addf %105, %110 : vector<2x128xf32>
    %112 = vector.extract_strided_slice %3 {offsets = [0, 13], sizes = [2, 1], strides = [1, 1]} : vector<2x16xf32> to vector<2x1xf32>
    %113 = vector.extract_strided_slice %31 {offsets = [13, 0], sizes = [1, 128], strides = [1, 1]} : vector<16x128xf32> to vector<1x128xf32>
    %114 = vector.broadcast %112 : vector<2x1xf32> to vector<2x128xf32>
    %115 = vector.broadcast %113 : vector<1x128xf32> to vector<2x128xf32>
    %116 = arith.mulf %114, %115 : vector<2x128xf32>
    %117 = arith.addf %111, %116 : vector<2x128xf32>
    %118 = vector.extract_strided_slice %3 {offsets = [0, 14], sizes = [2, 1], strides = [1, 1]} : vector<2x16xf32> to vector<2x1xf32>
    %119 = vector.extract_strided_slice %31 {offsets = [14, 0], sizes = [1, 128], strides = [1, 1]} : vector<16x128xf32> to vector<1x128xf32>
    %120 = vector.broadcast %118 : vector<2x1xf32> to vector<2x128xf32>
    %121 = vector.broadcast %119 : vector<1x128xf32> to vector<2x128xf32>
    %122 = arith.mulf %120, %121 : vector<2x128xf32>
    %123 = arith.addf %117, %122 : vector<2x128xf32>
    %124 = vector.extract_strided_slice %3 {offsets = [0, 15], sizes = [2, 1], strides = [1, 1]} : vector<2x16xf32> to vector<2x1xf32>
    %125 = vector.extract_strided_slice %31 {offsets = [15, 0], sizes = [1, 128], strides = [1, 1]} : vector<16x128xf32> to vector<1x128xf32>
    %126 = vector.broadcast %124 : vector<2x1xf32> to vector<2x128xf32>
    %127 = vector.broadcast %125 : vector<1x128xf32> to vector<2x128xf32>
    %128 = arith.mulf %126, %127 : vector<2x128xf32>
    %129 = arith.addf %123, %128 : vector<2x128xf32>
    %130 = vector.extract_strided_slice %129 {offsets = [0, 0], sizes = [1, 128], strides = [1, 1]} : vector<2x128xf32> to vector<1x128xf32>
    %131 = vector.extract_strided_slice %129 {offsets = [1, 0], sizes = [1, 128], strides = [1, 1]} : vector<2x128xf32> to vector<1x128xf32>
    %132 = arith.subf %130, %131 : vector<1x128xf32>
    %cst_9 = arith.constant 0.000000e+00 : f32
    %133 = vector.broadcast %cst_9 : f32 to vector<1x128xf32>
    %134 = arith.subf %133, %132 : vector<1x128xf32>
    %135 = math.exp %134 : vector<1x128xf32>
    %cst_10 = arith.constant 1.000000e+00 : f32
    %136 = vector.broadcast %cst_10 : f32 to vector<1x128xf32>
    %137 = arith.addf %136, %135 : vector<1x128xf32>
    %cst_11 = arith.constant 1.000000e+00 : f32
    %138 = vector.broadcast %cst_11 : f32 to vector<1x128xf32>
    %139 = arith.divf %138, %137 : vector<1x128xf32>
    %cst_12 = arith.constant 1.000000e+00 : f32
    %140 = vector.broadcast %cst_12 : f32 to vector<1x128xf32>
    %141 = arith.subf %140, %139 : vector<1x128xf32>
    %142 = tpu.concatenate %139, %141 in 0 : vector<1x128xf32>, vector<1x128xf32> -> vector<2x128xf32>
    %143 = tpu.transpose %142, [1, 0] : vector<2x128xf32> -> vector<128x2xf32>
    %c0_13 = arith.constant 0 : index
    %c0_14 = arith.constant 0 : index
    %144 = vector.load %arg6[%c0_13, %c0_14] : memref<128x2xf32, #tpu.memory_space<vmem>>, vector<128x2xf32>
    tpu.vector_store %arg6[%c0_13, %c0_14], %143 {strides = array<i32>} : memref<128x2xf32, #tpu.memory_space<vmem>>, vector<128x2xf32>,
    return
  }
  func.func @transform_0(%arg0: i32) -> (i32, i32) {
    %c0_i32 = arith.constant 0 : i32
    %c0_i32_0 = arith.constant 0 : i32
    return %arg0, %c0_i32 : i32, i32
  }
  func.func @transform_1(%arg0: i32) -> (i32, i32) {
    %c0_i32 = arith.constant 0 : i32
    %c0_i32_0 = arith.constant 0 : i32
    %c0_i32_1 = arith.constant 0 : i32
    return %c0_i32, %c0_i32_0 : i32, i32
  }
  func.func @transform_2(%arg0: i32) -> (i32, i32) {
    %c0_i32 = arith.constant 0 : i32
    %c0_i32_0 = arith.constant 0 : i32
    %c0_i32_1 = arith.constant 0 : i32
    return %c0_i32, %c0_i32_0 : i32, i32
  }
  func.func @transform_3(%arg0: i32) -> (i32, i32) {
    %c0_i32 = arith.constant 0 : i32
    %c0_i32_0 = arith.constant 0 : i32
    %c0_i32_1 = arith.constant 0 : i32
    return %c0_i32, %c0_i32_0 : i32, i32
  }
  func.func @transform_4(%arg0: i32) -> (i32, i32) {
    %c0_i32 = arith.constant 0 : i32
    %c0_i32_0 = arith.constant 0 : i32
    %c0_i32_1 = arith.constant 0 : i32
    return %c0_i32, %c0_i32_0 : i32, i32
  }
  func.func @transform_5(%arg0: i32) -> (i32, i32) {
    %c0_i32 = arith.constant 0 : i32
    %c0_i32_0 = arith.constant 0 : i32
    return %arg0, %c0_i32 : i32, i32
  }
}

</mosaic_0001>

<llo_original>
// kernel: policy_forward.1
$region0: #{policy_forward.1}
  #allocation0 [shape = 'u32[]', space=smem, size = 0x4, offset = 0x4, fixed_abs, tag = 'smem constant byte address 0x4 - core index']
  #allocation1 [shape = 'u32[144,128]{1,0:T(1,128)}', space=vmem, size = 0x12000, scoped, tag = 'internal scratch']
  %s0 = inlined_call_operand.vmem [shape: f32[128,4], index: 0, kind: input, shape index: {}]
  %s1 = inlined_call_operand.vmem [shape: f32[16,4], index: 1, kind: input, shape index: {}]
  %s2 = inlined_call_operand.vmem [shape: f32[16,1], index: 2, kind: input, shape index: {}]
  %s3 = inlined_call_operand.vmem [shape: f32[2,16], index: 3, kind: input, shape index: {}]
  %s4 = inlined_call_operand.vmem [shape: f32[2,1], index: 4, kind: input, shape index: {}]
  %s5 = inlined_call_operand.vmem [shape: f32[128,2], index: 5, kind: output, shape index: {}]
  %s6 = sld [smem:[#allocation0]]
  $region30: #{policy_forward.1} parent=0
    _
  %s8 = ssub.s32 1, %s6
  %s9 = scalar_select 0, %s8, %s6
  // Predicated region
  $region2: #{policy_forward.1} parent=0 // pred_check
    _
  $region3: #{policy_forward.1} parent=0 // pred_check_branch
    %11 = sbr.rel (0) target = $region5
  $region4: #{policy_forward.1} parent=0 // pred_region
    _
  $region5: #{policy_forward.1} parent=0 // pred_fallthru
    _
  // Predicated region
  $region6: #{policy_forward.1} parent=0 // pred_check
    _
  $region7: #{policy_forward.1} parent=0 // pred_check_branch
    %13 = sbr.rel (0) target = $region9
  $region8: #{policy_forward.1} parent=0 // pred_region
    _
  $region9: #{policy_forward.1} parent=0 // pred_fallthru
    _
  // Predicated region
  $region10: #{policy_forward.1} parent=0 // pred_check
    _
  $region11: #{policy_forward.1} parent=0 // pred_check_branch
    %15 = sbr.rel (0) target = $region13
  $region12: #{policy_forward.1} parent=0 // pred_region
    _
  $region13: #{policy_forward.1} parent=0 // pred_fallthru
    _
  // Predicated region
  $region14: #{policy_forward.1} parent=0 // pred_check
    _
  $region15: #{policy_forward.1} parent=0 // pred_check_branch
    %17 = sbr.rel (0) target = $region17
  $region16: #{policy_forward.1} parent=0 // pred_region
    _
  $region17: #{policy_forward.1} parent=0 // pred_fallthru
    _
  // Predicated region
  $region18: #{policy_forward.1} parent=0 // pred_check
    _
  $region19: #{policy_forward.1} parent=0 // pred_check_branch
    %19 = sbr.rel (0) target = $region21
  $region20: #{policy_forward.1} parent=0 // pred_region
    _
  $region21: #{policy_forward.1} parent=0 // pred_fallthru
    _
  %v20 = vld [vmem:[%s0] sm:$0xff]
  %v21 = vld [vmem:[%s0 + $0x8] sm:$0xff]
  %v22 = vld [vmem:[%s0 + $0x10] sm:$0xff]
  %v23 = vld [vmem:[%s0 + $0x18] sm:$0xff]
  %v24 = vld [vmem:[%s0 + $0x20] sm:$0xff]
  %v25 = vld [vmem:[%s0 + $0x28] sm:$0xff]
  %v26 = vld [vmem:[%s0 + $0x30] sm:$0xff]
  %v27 = vld [vmem:[%s0 + $0x38] sm:$0xff]
  %v28 = vld [vmem:[%s0 + $0x40] sm:$0xff]
  %v29 = vld [vmem:[%s0 + $0x48] sm:$0xff]
  %v30 = vld [vmem:[%s0 + $0x50] sm:$0xff]
  %v31 = vld [vmem:[%s0 + $0x58] sm:$0xff]
  %v32 = vld [vmem:[%s0 + $0x60] sm:$0xff]
  %v33 = vld [vmem:[%s0 + $0x68] sm:$0xff]
  %v34 = vld [vmem:[%s0 + $0x70] sm:$0xff]
  %v35 = vld [vmem:[%s0 + $0x78] sm:$0xff]
  %36 = vxpose.xlu0.b32.start [1/16] %v20, 128
  %37 = vxpose.xlu0.b32.cont [2/16] %v21, 128
  %38 = vxpose.xlu0.b32.cont [3/16] %v22, 128
  %39 = vxpose.xlu0.b32.cont [4/16] %v23, 128
  %40 = vxpose.xlu0.b32.cont [5/16] %v24, 128
  %41 = vxpose.xlu0.b32.cont [6/16] %v25, 128
  %42 = vxpose.xlu0.b32.cont [7/16] %v26, 128
  %43 = vxpose.xlu0.b32.cont [8/16] %v27, 128
  %44 = vxpose.xlu0.b32.cont [9/16] %v28, 128
  %45 = vxpose.xlu0.b32.cont [10/16] %v29, 128
  %46 = vxpose.xlu0.b32.cont [11/16] %v30, 128
  %47 = vxpose.xlu0.b32.cont [12/16] %v31, 128
  %48 = vxpose.xlu0.b32.cont [13/16] %v32, 128
  %49 = vxpose.xlu0.b32.cont [14/16] %v33, 128
  %50 = vxpose.xlu0.b32.cont [15/16] %v34, 128
  %51 = vxpose.xlu0.b32.end [16/16] %v35, 128
  %v52 = vpop.trf.xlu0
  %v53 = vpop.trf.xlu0
  %v54 = vpop.trf.xlu0
  %v55 = vpop.trf.xlu0
  %v56 = vpop.trf.xlu0
  %v57 = vpop.trf.xlu0
  %v58 = vpop.trf.xlu0
  %v59 = vpop.trf.xlu0
  %v60 = vpop.trf.xlu0
  %v61 = vpop.trf.xlu0
  %v62 = vpop.trf.xlu0
  %v63 = vpop.trf.xlu0
  %v64 = vpop.trf.xlu0
  %v65 = vpop.trf.xlu0
  %v66 = vpop.trf.xlu0
  %v67 = vpop.trf.xlu0
  %v68 = vld [vmem:[%s1] sm:$0xff]
  %v69 = vld [vmem:[%s1 + $0x8] sm:$0xff]
  %v70 = vld [vmem:[%s3] sm:$0x3]
  %v71 = vld [vmem:[%s2] sm:$0xff]
  %v72 = vld [vmem:[%s2 + $0x8] sm:$0xff]
  %74 = vset.pattern.permute.xlu0 0
  %75 = vperm.xlu0 %74, %v68
  %v76 = vpop.permute.xlu0 %75
  %79 = vset.pattern.permute.xlu0 0
  %80 = vperm.xlu0 %79, %v69
  %v81 = vpop.permute.xlu0 %80
  %v83 = vlaneseq
  %v84 = vshrl.u32 %v83, 7
  %v85 = vsub.s32 0, %v84
  %v86 = vrot.slane %v52, %v85
  %v87 = vmul.f32 %v76, %v86
  %v88 = vmul.f32 %v81, %v86
  %90 = vset.pattern.permute.xlu0 0
  %91 = vperm.xlu0 %90, %v71
  %v92 = vpop.permute.xlu0 %91
  %95 = vset.pattern.permute.xlu0 0
  %96 = vperm.xlu0 %95, %v72
  %v97 = vpop.permute.xlu0 %96
  %v99 = vadd.f32 %v92, %v87
  %v100 = vadd.f32 %v97, %v88
  %101 = vset.pattern.permute.xlu0 1
  %102 = vperm.xlu0 %101, %v68
  %v103 = vpop.permute.xlu0 %102
  %105 = vset.pattern.permute.xlu0 1
  %106 = vperm.xlu0 %105, %v69
  %v107 = vpop.permute.xlu0 %106
  %v109 = vlaneseq
  %v110 = vshrl.u32 %v109, 7
  %v111 = vsub.s32 1, %v110
  %v112 = vrot.slane %v52, %v111
  %v113 = vmul.f32 %v103, %v112
  %v114 = vmul.f32 %v107, %v112
  %v115 = vadd.f32 %v99, %v113
  %v116 = vadd.f32 %v100, %v114
  %117 = vset.pattern.permute.xlu0 2
  %118 = vperm.xlu0 %117, %v68
  %v119 = vpop.permute.xlu0 %118
  %121 = vset.pattern.permute.xlu0 2
  %122 = vperm.xlu0 %121, %v69
  %v123 = vpop.permute.xlu0 %122
  %v125 = vlaneseq
  %v126 = vshrl.u32 %v125, 7
  %v127 = vsub.s32 2, %v126
  %v128 = vrot.slane %v52, %v127
  %v129 = vmul.f32 %v119, %v128
  %v130 = vmul.f32 %v123, %v128
  %v131 = vadd.f32 %v115, %v129
  %v132 = vadd.f32 %v116, %v130
  %133 = vset.pattern.permute.xlu0 3
  %134 = vperm.xlu0 %133, %v68
  %v135 = vpop.permute.xlu0 %134
  %137 = vset.pattern.permute.xlu0 3
  %138 = vperm.xlu0 %137, %v69
  %v139 = vpop.permute.xlu0 %138
  %v141 = vlaneseq
  %v142 = vshrl.u32 %v141, 7
  %v143 = vsub.s32 3, %v142
  %v144 = vrot.slane %v52, %v143
  %v145 = vmul.f32 %v135, %v144
  %v146 = vmul.f32 %v139, %v144
  %v147 = vadd.f32 %v131, %v145
  %v148 = vadd.f32 %v132, %v146
  %v149 = vmax.f32 %v147, 0.0
  %v150 = vmax.f32 %v148, 0.0
  %v151 = vld [vmem:[%s4] sm:$0x3]
  %153 = vset.pattern.permute.xlu0 0
  %154 = vperm.xlu0 %153, %v70
  %v155 = vpop.permute.xlu0 %154
  %v157 = vlaneseq
  %v158 = vshrl.u32 %v157, 7
  %v159 = vsub.s32 0, %v158
  %v160 = vrot.slane %v149, %v159
  %v161 = vmul.f32 %v155, %v160
  %163 = vset.pattern.permute.xlu0 0
  %164 = vperm.xlu0 %163, %v151
  %v165 = vpop.permute.xlu0 %164
  %v167 = vadd.f32 %v165, %v161
  %168 = vset.pattern.permute.xlu0 1
  %169 = vperm.xlu0 %168, %v70
  %v170 = vpop.permute.xlu0 %169
  %v172 = vlaneseq
  %v173 = vshrl.u32 %v172, 7
  %v174 = vsub.s32 1, %v173
  %v175 = vrot.slane %v149, %v174
  %v176 = vmul.f32 %v170, %v175
  %v177 = vadd.f32 %v167, %v176
  %178 = vset.pattern.permute.xlu0 2
  %179 = vperm.xlu0 %178, %v70
  %v180 = vpop.permute.xlu0 %179
  %v182 = vlaneseq
  %v183 = vshrl.u32 %v182, 7
  %v184 = vsub.s32 2, %v183
  %v185 = vrot.slane %v149, %v184
  %v186 = vmul.f32 %v180, %v185
  %v187 = vadd.f32 %v177, %v186
  %188 = vset.pattern.permute.xlu0 3
  %189 = vperm.xlu0 %188, %v70
  %v190 = vpop.permute.xlu0 %189
  %v192 = vlaneseq
  %v193 = vshrl.u32 %v192, 7
  %v194 = vsub.s32 3, %v193
  %v195 = vrot.slane %v149, %v194
  %v196 = vmul.f32 %v190, %v195
  %v197 = vadd.f32 %v187, %v196
  %198 = vset.pattern.permute.xlu0 4
  %199 = vperm.xlu0 %198, %v70
  %v200 = vpop.permute.xlu0 %199
  %v202 = vlaneseq
  %v203 = vshrl.u32 %v202, 7
  %v204 = vsub.s32 4, %v203
  %v205 = vrot.slane %v149, %v204
  %v206 = vmul.f32 %v200, %v205
  %v207 = vadd.f32 %v197, %v206
  %208 = vset.pattern.permute.xlu0 5
  %209 = vperm.xlu0 %208, %v70
  %v210 = vpop.permute.xlu0 %209
  %v212 = vlaneseq
  %v213 = vshrl.u32 %v212, 7
  %v214 = vsub.s32 5, %v213
  %v215 = vrot.slane %v149, %v214
  %v216 = vmul.f32 %v210, %v215
  %v217 = vadd.f32 %v207, %v216
  %218 = vset.pattern.permute.xlu0 6
  %219 = vperm.xlu0 %218, %v70
  %v220 = vpop.permute.xlu0 %219
  %v222 = vlaneseq
  %v223 = vshrl.u32 %v222, 7
  %v224 = vsub.s32 6, %v223
  %v225 = vrot.slane %v149, %v224
  %v226 = vmul.f32 %v220, %v225
  %v227 = vadd.f32 %v217, %v226
  %228 = vset.pattern.permute.xlu0 7
  %229 = vperm.xlu0 %228, %v70
  %v230 = vpop.permute.xlu0 %229
  %v232 = vlaneseq
  %v233 = vshrl.u32 %v232, 7
  %v234 = vsub.s32 7, %v233
  %v235 = vrot.slane %v149, %v234
  %v236 = vmul.f32 %v230, %v235
  %v237 = vadd.f32 %v227, %v236
  %238 = vset.pattern.permute.xlu0 8
  %239 = vperm.xlu0 %238, %v70
  %v240 = vpop.permute.xlu0 %239
  %v242 = vlaneseq
  %v243 = vshrl.u32 %v242, 7
  %v244 = vsub.s32 0, %v243
  %v245 = vrot.slane %v150, %v244
  %v246 = vmul.f32 %v240, %v245
  %v247 = vadd.f32 %v237, %v246
  %248 = vset.pattern.permute.xlu0 9
  %249 = vperm.xlu0 %248, %v70
  %v250 = vpop.permute.xlu0 %249
  %v252 = vlaneseq
  %v253 = vshrl.u32 %v252, 7
  %v254 = vsub.s32 1, %v253
  %v255 = vrot.slane %v150, %v254
  %v256 = vmul.f32 %v250, %v255
  %v257 = vadd.f32 %v247, %v256
  %258 = vset.pattern.permute.xlu0 10
  %259 = vperm.xlu0 %258, %v70
  %v260 = vpop.permute.xlu0 %259
  %v262 = vlaneseq
  %v263 = vshrl.u32 %v262, 7
  %v264 = vsub.s32 2, %v263
  %v265 = vrot.slane %v150, %v264
  %v266 = vmul.f32 %v260, %v265
  %v267 = vadd.f32 %v257, %v266
  %268 = vset.pattern.permute.xlu0 11
  %269 = vperm.xlu0 %268, %v70
  %v270 = vpop.permute.xlu0 %269
  %v272 = vlaneseq
  %v273 = vshrl.u32 %v272, 7
  %v274 = vsub.s32 3, %v273
  %v275 = vrot.slane %v150, %v274
  %v276 = vmul.f32 %v270, %v275
  %v277 = vadd.f32 %v267, %v276
  %278 = vset.pattern.permute.xlu0 12
  %279 = vperm.xlu0 %278, %v70
  %v280 = vpop.permute.xlu0 %279
  %v282 = vlaneseq
  %v283 = vshrl.u32 %v282, 7
  %v284 = vsub.s32 4, %v283
  %v285 = vrot.slane %v150, %v284
  %v286 = vmul.f32 %v280, %v285
  %v287 = vadd.f32 %v277, %v286
  %288 = vset.pattern.permute.xlu0 13
  %289 = vperm.xlu0 %288, %v70
  %v290 = vpop.permute.xlu0 %289
  %v292 = vlaneseq
  %v293 = vshrl.u32 %v292, 7
  %v294 = vsub.s32 5, %v293
  %v295 = vrot.slane %v150, %v294
  %v296 = vmul.f32 %v290, %v295
  %v297 = vadd.f32 %v287, %v296
  %298 = vset.pattern.permute.xlu0 14
  %299 = vperm.xlu0 %298, %v70
  %v300 = vpop.permute.xlu0 %299
  %v302 = vlaneseq
  %v303 = vshrl.u32 %v302, 7
  %v304 = vsub.s32 6, %v303
  %v305 = vrot.slane %v150, %v304
  %v306 = vmul.f32 %v300, %v305
  %v307 = vadd.f32 %v297, %v306
  %308 = vset.pattern.permute.xlu0 15
  %309 = vperm.xlu0 %308, %v70
  %v310 = vpop.permute.xlu0 %309
  %v312 = vlaneseq
  %v313 = vshrl.u32 %v312, 7
  %v314 = vsub.s32 7, %v313
  %v315 = vrot.slane %v150, %v314
  %v316 = vmul.f32 %v310, %v315
  %v317 = vadd.f32 %v307, %v316
  %v319 = vrot.slane %v317, 1
  %v321 = vsub.f32 %v317, %v319
  %v322 = vsub.f32 0.0, %v321
  %v323 = vmul.f32 %v322, 1.442695
  %v324 = vpow.pop %v323
  %v325 = vadd.f32 %v324, 1.0
  %v326 = vrcp.pop %v325
  %v327 = vmul.f32 1.0, %v326
  %v328 = vsub.f32 1.0, %v327
  %v330 = vrot.slane %v328, 7
  %vm332 = vcmask 1040384
  %v333 = vsel %vm332, %v327, %v330
  %334 = vxpose.xlu0.b32.start [1/16] %v333, 128
  %335 = vxpose.xlu0.b32.cont [2/16] 0.0, 128
  %336 = vxpose.xlu0.b32.cont [3/16] 0.0, 128
  %337 = vxpose.xlu0.b32.cont [4/16] 0.0, 128
  %338 = vxpose.xlu0.b32.cont [5/16] 0.0, 128
  %339 = vxpose.xlu0.b32.cont [6/16] 0.0, 128
  %340 = vxpose.xlu0.b32.cont [7/16] 0.0, 128
  %341 = vxpose.xlu0.b32.cont [8/16] 0.0, 128
  %342 = vxpose.xlu0.b32.cont [9/16] 0.0, 128
  %343 = vxpose.xlu0.b32.cont [10/16] 0.0, 128
  %344 = vxpose.xlu0.b32.cont [11/16] 0.0, 128
  %345 = vxpose.xlu0.b32.cont [12/16] 0.0, 128
  %346 = vxpose.xlu0.b32.cont [13/16] 0.0, 128
  %347 = vxpose.xlu0.b32.cont [14/16] 0.0, 128
  %348 = vxpose.xlu0.b32.cont [15/16] 0.0, 128
  %349 = vxpose.xlu0.b32.end [16/16] 0.0, 128
  %v350 = vpop.trf.xlu0
  %v351 = vpop.trf.xlu0
  %v352 = vpop.trf.xlu0
  %v353 = vpop.trf.xlu0
  %v354 = vpop.trf.xlu0
  %v355 = vpop.trf.xlu0
  %v356 = vpop.trf.xlu0
  %v357 = vpop.trf.xlu0
  %v358 = vpop.trf.xlu0
  %v359 = vpop.trf.xlu0
  %v360 = vpop.trf.xlu0
  %v361 = vpop.trf.xlu0
  %v362 = vpop.trf.xlu0
  %v363 = vpop.trf.xlu0
  %v364 = vpop.trf.xlu0
  %v365 = vpop.trf.xlu0
  %vm366 = vcmask 15360
  %367 = vst.msk [vmem:[%s5] sm:$0xff] %vm366, %v350
  %368 = vst.msk [vmem:[%s5 + $0x8] sm:$0xff] %vm366, %v351
  %369 = vst.msk [vmem:[%s5 + $0x10] sm:$0xff] %vm366, %v352
  %370 = vst.msk [vmem:[%s5 + $0x18] sm:$0xff] %vm366, %v353
  %371 = vst.msk [vmem:[%s5 + $0x20] sm:$0xff] %vm366, %v354
  %372 = vst.msk [vmem:[%s5 + $0x28] sm:$0xff] %vm366, %v355
  %373 = vst.msk [vmem:[%s5 + $0x30] sm:$0xff] %vm366, %v356
  %374 = vst.msk [vmem:[%s5 + $0x38] sm:$0xff] %vm366, %v357
  %375 = vst.msk [vmem:[%s5 + $0x40] sm:$0xff] %vm366, %v358
  %376 = vst.msk [vmem:[%s5 + $0x48] sm:$0xff] %vm366, %v359
  %377 = vst.msk [vmem:[%s5 + $0x50] sm:$0xff] %vm366, %v360
  %378 = vst.msk [vmem:[%s5 + $0x58] sm:$0xff] %vm366, %v361
  %379 = vst.msk [vmem:[%s5 + $0x60] sm:$0xff] %vm366, %v362
  %380 = vst.msk [vmem:[%s5 + $0x68] sm:$0xff] %vm366, %v363
  %381 = vst.msk [vmem:[%s5 + $0x70] sm:$0xff] %vm366, %v364
  %382 = vst.msk [vmem:[%s5 + $0x78] sm:$0xff] %vm366, %v365
  // Predicated region
  $region22: #{policy_forward.1} parent=0 // pred_check
    _
  $region23: #{policy_forward.1} parent=0 // pred_check_branch
    %384 = sbr.rel (0) target = $region25
  $region24: #{policy_forward.1} parent=0 // pred_region
    _
  $region25: #{policy_forward.1} parent=0 // pred_fallthru
    _
  // Predicated region
  $region26: #{policy_forward.1} parent=0 // pred_check
    _
  $region27: #{policy_forward.1} parent=0 // pred_check_branch
    %386 = sbr.rel (0) target = $region29
  $region28: #{policy_forward.1} parent=0 // pred_region
    _
  $region29: #{policy_forward.1} parent=0 // pred_fallthru
    _

</llo_original>
